<compile_context>
chip_gen: v7x
topology: tpu7x:2x2x1
jax: 0.10.0
libtpu: 0.0.40
codegen_flags: <defaults>
</compile_context>

<pallas_src>
import functools
import math

import jax
import jax.numpy as jnp
from jax.experimental import pallas as pl
from jax.experimental.pallas import tpu as pltpu


def _caption_loss_kernel(logits_ref, xtgt_ref, loss_ref, *, a, b, const_tlogt, n_class):
    """One (row_tile, C) logits block -> (row_tile, 1) per-row label-smoothed KL loss."""
    x = logits_ref[...].astype(jnp.float32)        # (TM, C); bf16 HBM -> f32 in-register
    x_tgt = xtgt_ref[...].astype(jnp.float32)      # (TM, 1) logit at the target column

    # log_softmax pieces (dim=1): log_prb = (x - m) - lse
    m = jnp.max(x, axis=1, keepdims=True)          # (TM, 1)
    z = x - m
    lse = jnp.log(jnp.sum(jnp.exp(z), axis=1, keepdims=True))   # (TM, 1)
    log_p_tgt = (x_tgt - m) - lse                  # log_prb[target], no in-kernel gather

    # sum_c(smooth * log_prb) = a * sum_c(log_prb) + b * log_prb[target]
    #   with sum_c(log_prb) = sum_c(z) - C * lse
    if a != 0.0:                                   # eps > 0 (static at trace time)
        sum_z = jnp.sum(z, axis=1, keepdims=True)
        cross = a * (sum_z - float(n_class) * lse) + b * log_p_tgt
    else:                                          # eps == 0: plain cross-entropy
        cross = b * log_p_tgt

    # KLDivLoss(reduction='none').sum(1) per row == sum_c t*log(t) - sum_c t*log_prb
    loss_ref[...] = const_tlogt - cross


def _vmem_capacity_bytes():
    """Physical per-core VMEM; conservative 64 MiB (v7x) fallback works on all generations."""
    try:
        return int(pltpu.get_tpu_info().vmem_capacity_bytes)
    except Exception:
        return 64 << 20


def _round_up(x, q):
    return ((x + q - 1) // q) * q


def _pick_row_tile(n, c, itemsize, vmem_bytes):
    """Row tile such that 2x input block + ~4x f32 temporaries fit in ~half of VMEM."""
    quantum = {4: 8, 2: 16, 1: 32}.get(itemsize, 8)     # dtype-aware sublane packing quantum
    per_row = c * (2 * itemsize + 4 * 4)                # 2x DMA-buffered input + ~4 f32 temps
    budget = vmem_bytes // 2                            # leave half of VMEM as headroom
    cap = max(quantum, (budget // max(1, per_row)) // quantum * quantum)
    cap = min(cap, 2048)     # past ~8 MiB blocks the 0.35us/step overhead is already <1%
    return min(cap, max(quantum, _round_up(n, quantum)))


def bert_captioning_loss(logits, target, *, label_smoothing=0.0,
                         drop_worst_ratio=0.0, row_tile=None):
    """Pallas implementation of BertCaptioningLoss.forward.

    Pass bf16 logits directly if that is their storage dtype -- the kernel upcasts
    in-register, and halving HBM bytes is ~2x wall-clock on v5e/v6e.
    """
    if drop_worst_ratio > 0.0:
        # TODO(synk): drop_worst_ratio>0 path (torch.topk over per-row losses) not implemented;
        # module defaults (drop_worst_ratio=0) never take that branch.
        raise NotImplementedError("drop_worst_ratio > 0 is not supported")

    n, c = logits.shape
    eps = float(label_smoothing)
    itemsize = jnp.dtype(logits.dtype).itemsize
    vmem_bytes = _vmem_capacity_bytes()
    if row_tile is None:
        row_tile = _pick_row_tile(n, c, itemsize, vmem_bytes)
    assert row_tile % 8 == 0, "row_tile must be a multiple of 8 (sublane quantum)"

    # Target-class logit gathered in the wrapper (reads ~N values, not N*C), so the kernel
    # never does an iota/compare/select pick across the class axis.
    x_tgt = jnp.take_along_axis(logits, target.astype(jnp.int32).reshape(n, 1), axis=1)

    # Compile-time constants of the label-smoothing algebra:
    #   smooth = one_hot*(1-eps) + (1-one_hot)*eps/(C-1);  a = eps/(C-1), b = 1-eps-a
    #   row_loss = sum_c smooth*log(smooth) - sum_c smooth*log_prb
    a = eps / (c - 1)
    b = 1.0 - eps - a
    t1 = (1.0 - eps) * math.log(1.0 - eps) if eps < 1.0 else 0.0
    t2 = eps * math.log(eps / (c - 1)) if eps > 0.0 else 0.0
    const_tlogt = t1 + t2                                 # sum_c t*log(t), same for every row

    grid = pl.cdiv(n, row_tile)                           # partial last block handled by Pallas
    in_block = row_tile * c * itemsize
    f32_block = row_tile * c * 4
    needed = 2 * in_block + 4 * f32_block + 8 * row_tile * 16 + (2 << 20)
    vmem_limit = int(max(min(needed + (4 << 20), (vmem_bytes * 3) // 4), 16 << 20))

    row_losses = pl.pallas_call(
        functools.partial(
            _caption_loss_kernel, a=a, b=b, const_tlogt=const_tlogt, n_class=c
        ),
        out_shape=jax.ShapeDtypeStruct((n, 1), jnp.float32),
        grid_spec=pltpu.PrefetchScalarGridSpec(
            num_scalar_prefetch=0,
            grid=(grid,),
            in_specs=[
                pl.BlockSpec((row_tile, c), lambda i: (i, 0)),
                pl.BlockSpec((row_tile, 1), lambda i: (i, 0)),
            ],
            out_specs=pl.BlockSpec((row_tile, 1), lambda i: (i, 0)),
        ),
        compiler_params=pltpu.CompilerParams(
            dimension_semantics=("parallel",),   # independent row blocks -> megacore on v7x
            vmem_limit_bytes=vmem_limit,
        ),
    )(logits, x_tgt)
    return jnp.mean(row_losses)                           # loss.mean() over all N rows


def _reference_loss(logits, target, eps):
    """Pure-JAX port of the PyTorch forward (materialized, for correctness check only)."""
    n, c = logits.shape
    one_hot = jax.nn.one_hot(target, c, dtype=jnp.float32)
    smooth = one_hot * (1.0 - eps) + (1.0 - one_hot) * (eps / (c - 1))
    log_prb = jax.nn.log_softmax(logits.astype(jnp.float32), axis=1)
    safe = jnp.where(smooth > 0, smooth, 1.0)
    kl = jnp.where(smooth > 0, smooth * jnp.log(safe), 0.0) - smooth * log_prb
    return jnp.mean(jnp.sum(kl, axis=1))


if __name__ == "__main__":
    # Small shapes implied by the forward: logits (N, n_class), target (N,)
    N, C = 16, 32
    label_smoothing = 0.1  # config.label_smoothing (deterministic, in-script)

    key = jax.random.PRNGKey(0)
    k_logits, k_tgt, k_logits2, k_tgt2 = jax.random.split(key, 4)
    logits = jax.random.normal(k_logits, (N, C), dtype=jnp.float32)
    target = jax.random.randint(k_tgt, (N,), 0, C, dtype=jnp.int32)

    # 1) default (auto row tile) with label smoothing
    loss = jax.block_until_ready(
        bert_captioning_loss(logits, target, label_smoothing=label_smoothing)
    )
    ref = _reference_loss(logits, target, label_smoothing)
    assert jnp.allclose(loss, ref, rtol=1e-5, atol=1e-5), (loss, ref)

    # 2) explicit smaller row tile (multi-step, fully parallel grid path)
    loss_t = jax.block_until_ready(
        bert_captioning_loss(logits, target, label_smoothing=label_smoothing, row_tile=8)
    )
    assert jnp.allclose(loss_t, ref, rtol=1e-5, atol=1e-5), (loss_t, ref)

    # 3) N not divisible by the row tile (partial, masked last block)
    N2 = 20
    logits2 = jax.random.normal(k_logits2, (N2, C), dtype=jnp.float32)
    target2 = jax.random.randint(k_tgt2, (N2,), 0, C, dtype=jnp.int32)
    loss_p = jax.block_until_ready(
        bert_captioning_loss(logits2, target2, label_smoothing=label_smoothing, row_tile=8)
    )
    ref_p = _reference_loss(logits2, target2, label_smoothing)
    assert jnp.allclose(loss_p, ref_p, rtol=1e-5, atol=1e-5), (loss_p, ref_p)

    # 4) eps = 0 path (pure cross-entropy branch in the kernel)
    loss0 = jax.block_until_ready(bert_captioning_loss(logits, target, label_smoothing=0.0))
    ref0 = _reference_loss(logits, target, 0.0)
    assert jnp.allclose(loss0, ref0, rtol=1e-5, atol=1e-5), (loss0, ref0)

    # 5) bf16 logits in HBM (kernel upcasts in-register) - loose tolerance vs f32 reference
    loss_bf16 = jax.block_until_ready(
        bert_captioning_loss(
            logits.astype(jnp.bfloat16), target, label_smoothing=label_smoothing
        )
    )
    assert jnp.allclose(loss_bf16, ref, rtol=2e-2, atol=2e-2), (loss_bf16, ref)

    print("KERNEL_OK")
</pallas_src>

<mosaic_0001>
module attributes {stable_mosaic.version = 11 : i64} {
  func.func @_caption_loss_kernel(%arg0: i32, %arg1: memref<16x32xf32, #tpu.memory_space<vmem>>, %arg2: memref<16x1xf32, #tpu.memory_space<vmem>>, %arg3: memref<16x1xf32, #tpu.memory_space<vmem>>) attributes {dimension_semantics = [#tpu.dimension_semantics<parallel>], iteration_bounds = array<i64: 1>, scalar_prefetch = 0 : i64, scratch_operands = 0 : i64, tpu.core_type = #tpu.core_type<tc>, window_params = [{transform_indices = @transform_0, window_bounds = array<i64: 16, 32>}, {transform_indices = @transform_1, window_bounds = array<i64: 16, 1>}, {transform_indices = @transform_2, window_bounds = array<i64: 16, 1>}]} {
    %c0 = arith.constant 0 : index
    %c0_0 = arith.constant 0 : index
    %0 = vector.load %arg1[%c0, %c0_0] : memref<16x32xf32, #tpu.memory_space<vmem>>, vector<16x32xf32>
    %c0_1 = arith.constant 0 : index
    %c0_2 = arith.constant 0 : index
    %1 = vector.load %arg2[%c0_1, %c0_2] : memref<16x1xf32, #tpu.memory_space<vmem>>, vector<16x1xf32>
    %cst = arith.constant dense<0xFF800000> : vector<16xf32>
    %2 = vector.multi_reduction <maximumf>, %0, %cst [1] : vector<16x32xf32> to vector<16xf32>
    %3 = vector.shape_cast %2 : vector<16xf32> to vector<16x1xf32>
    %4 = vector.broadcast %3 : vector<16x1xf32> to vector<16x32xf32>
    %5 = arith.subf %0, %4 : vector<16x32xf32>
    %6 = math.exp %5 : vector<16x32xf32>
    %cst_3 = arith.constant dense<0.000000e+00> : vector<16xf32>
    %7 = vector.multi_reduction <add>, %6, %cst_3 [1] : vector<16x32xf32> to vector<16xf32>
    %8 = vector.shape_cast %7 : vector<16xf32> to vector<16x1xf32>
    %9 = math.log %8 : vector<16x1xf32>
    %10 = arith.subf %1, %3 : vector<16x1xf32>
    %11 = arith.subf %10, %9 : vector<16x1xf32>
    %cst_4 = arith.constant dense<0.000000e+00> : vector<16xf32>
    %12 = vector.multi_reduction <add>, %5, %cst_4 [1] : vector<16x32xf32> to vector<16xf32>
    %13 = vector.shape_cast %12 : vector<16xf32> to vector<16x1xf32>
    %cst_5 = arith.constant 3.200000e+01 : f32
    %14 = vector.broadcast %cst_5 : f32 to vector<16x1xf32>
    %15 = arith.mulf %14, %9 : vector<16x1xf32>
    %16 = arith.subf %13, %15 : vector<16x1xf32>
    %cst_6 = arith.constant 0.0032258064 : f32
    %17 = vector.broadcast %cst_6 : f32 to vector<16x1xf32>
    %18 = arith.mulf %17, %16 : vector<16x1xf32>
    %cst_7 = arith.constant 0.896774172 : f32
    %19 = vector.broadcast %cst_7 : f32 to vector<16x1xf32>
    %20 = arith.mulf %19, %11 : vector<16x1xf32>
    %21 = arith.addf %18, %20 : vector<16x1xf32>
    %cst_8 = arith.constant -0.668481708 : f32
    %22 = vector.broadcast %cst_8 : f32 to vector<16x1xf32>
    %23 = arith.subf %22, %21 : vector<16x1xf32>
    %c0_9 = arith.constant 0 : index
    %c0_10 = arith.constant 0 : index
    %24 = vector.load %arg3[%c0_9, %c0_10] : memref<16x1xf32, #tpu.memory_space<vmem>>, vector<16x1xf32>
    tpu.vector_store %arg3[%c0_9, %c0_10], %23 {strides = array<i32>} : memref<16x1xf32, #tpu.memory_space<vmem>>, vector<16x1xf32>,
    return
  }
  func.func @transform_0(%arg0: i32) -> (i32, i32) {
    %c0_i32 = arith.constant 0 : i32
    %c0_i32_0 = arith.constant 0 : i32
    return %arg0, %c0_i32 : i32, i32
  }
  func.func @transform_1(%arg0: i32) -> (i32, i32) {
    %c0_i32 = arith.constant 0 : i32
    %c0_i32_0 = arith.constant 0 : i32
    return %arg0, %c0_i32 : i32, i32
  }
  func.func @transform_2(%arg0: i32) -> (i32, i32) {
    %c0_i32 = arith.constant 0 : i32
    %c0_i32_0 = arith.constant 0 : i32
    return %arg0, %c0_i32 : i32, i32
  }
}

</mosaic_0001>

<llo_original>
// kernel: tpu_custom_call.1
$region0: #{tpu_custom_call.1}
  #allocation0 [shape = 'u32[]', space=smem, size = 0x4, offset = 0x4, fixed_abs, tag = 'smem constant byte address 0x4 - core index']
  #allocation1 [shape = 'u32[144,128]{1,0:T(1,128)}', space=vmem, size = 0x12000, scoped, tag = 'internal scratch']
  %s0 = inlined_call_operand.vmem [shape: f32[16,32], index: 0, kind: input, shape index: {}]
  %s1 = inlined_call_operand.vmem [shape: f32[16,1], index: 1, kind: input, shape index: {}]
  %s2 = inlined_call_operand.vmem [shape: f32[16,1], index: 2, kind: output, shape index: {}]
  %s3 = sld [smem:[#allocation0]]
  $region18: #{tpu_custom_call.1} parent=0
    _
  %s5 = ssub.s32 1, %s3
  %s6 = scalar_select 0, %s5, %s3
  // Predicated region
  $region2: #{tpu_custom_call.1} parent=0 // pred_check
    _
  $region3: #{tpu_custom_call.1} parent=0 // pred_check_branch
    %8 = sbr.rel (0) target = $region5
  $region4: #{tpu_custom_call.1} parent=0 // pred_region
    _
  $region5: #{tpu_custom_call.1} parent=0 // pred_fallthru
    _
  // Predicated region
  $region6: #{tpu_custom_call.1} parent=0 // pred_check
    _
  $region7: #{tpu_custom_call.1} parent=0 // pred_check_branch
    %10 = sbr.rel (0) target = $region9
  $region8: #{tpu_custom_call.1} parent=0 // pred_region
    _
  $region9: #{tpu_custom_call.1} parent=0 // pred_fallthru
    _
  %v11 = vld [vmem:[%s0] sm:$0xff]
  %v12 = vld [vmem:[%s0 + $0x8] sm:$0xff]
  %v13 = vld [vmem:[%s1] sm:$0xff]
  %v14 = vld [vmem:[%s1 + $0x8] sm:$0xff]
  %vm15 = vcmask 261120
  %v16 = vsel %vm15, %v11, -inf
  %17 = vmax.xlane.f32.xlu0 %v16
  %v18 = vpop.xlane.xlu0 %17
  %v19 = vsel %vm15, %v12, -inf
  %20 = vmax.xlane.f32.xlu0 %v19
  %v21 = vpop.xlane.xlu0 %20
  %v22 = vsub.f32 %v11, %v18
  %v23 = vsub.f32 %v12, %v21
  %v24 = vmul.f32 %v22, 1.442695
  %v25 = vpow.pop %v24
  %v26 = vmul.f32 %v23, 1.442695
  %v27 = vpow.pop %v26
  %v28 = vsel %vm15, %v25, 0.0
  %29 = vadd.xlane.f32.xlu0 %v28
  %v30 = vpop.xlane.xlu0 %29
  %v31 = vsel %vm15, %v27, 0.0
  %32 = vadd.xlane.f32.xlu0 %v31
  %v33 = vpop.xlane.xlu0 %32
  %v34 = vlog2.pop %v30
  %v35 = vmul.f32 %v34, 0.6931472
  %v36 = vlog2.pop %v33
  %v37 = vmul.f32 %v36, 0.6931472
  %v38 = vsub.f32 %v13, %v18
  %v39 = vsub.f32 %v14, %v21
  %v40 = vsub.f32 %v38, %v35
  %v41 = vsub.f32 %v39, %v37
  %v42 = vsel %vm15, %v22, 0.0
  %43 = vadd.xlane.f32.xlu0 %v42
  %v44 = vpop.xlane.xlu0 %43
  %v45 = vsel %vm15, %v23, 0.0
  %46 = vadd.xlane.f32.xlu0 %v45
  %v47 = vpop.xlane.xlu0 %46
  %v48 = vmul.f32 %v35, 32.0
  %v49 = vmul.f32 %v37, 32.0
  %v50 = vsub.f32 %v44, %v48
  %v51 = vsub.f32 %v47, %v49
  %v52 = vmul.f32 %v50, 0.0032258064
  %v53 = vmul.f32 %v51, 0.0032258064
  %v54 = vmul.f32 %v40, 0.8967742
  %v55 = vmul.f32 %v41, 0.8967742
  %v56 = vadd.f32 %v52, %v54
  %v57 = vadd.f32 %v53, %v55
  %v58 = vsub.f32 -0.6684817, %v56
  %v59 = vsub.f32 -0.6684817, %v57
  %vm60 = vcmask 7168
  %61 = vst.msk [vmem:[%s2] sm:$0xff] %vm60, %v58
  %62 = vst.msk [vmem:[%s2 + $0x8] sm:$0xff] %vm60, %v59
  // Predicated region
  $region10: #{tpu_custom_call.1} parent=0 // pred_check
    _
  $region11: #{tpu_custom_call.1} parent=0 // pred_check_branch
    %64 = sbr.rel (0) target = $region13
  $region12: #{tpu_custom_call.1} parent=0 // pred_region
    _
  $region13: #{tpu_custom_call.1} parent=0 // pred_fallthru
    _
  // Predicated region
  $region14: #{tpu_custom_call.1} parent=0 // pred_check
    _
  $region15: #{tpu_custom_call.1} parent=0 // pred_check_branch
    %66 = sbr.rel (0) target = $region17
  $region16: #{tpu_custom_call.1} parent=0 // pred_region
    _
  $region17: #{tpu_custom_call.1} parent=0 // pred_fallthru
    _

</llo_original>
